<compile_context>
chip_gen: v7x
topology: tpu7x:2x2x1
jax: 0.10.0
libtpu: 0.0.40
codegen_flags: <defaults>
</compile_context>

<pallas_src>
import functools

import jax
import jax.numpy as jnp
from jax.experimental import pallas as pl
from jax.experimental.pallas import tpu as pltpu

LANE = 128


def _round_up(x, m):
    return (x + m - 1) // m * m


def _vmem_capacity_bytes():
    try:
        return int(pltpu.get_tpu_info().vmem_capacity_bytes)
    except Exception:
        return 64 * 2**20  # conservative v7x floor


def _vmem_limit(foot_bytes, cap):
    # requested footprint + headroom, floored at 16 MiB, capped at 75% of physical.
    return int(min(max(foot_bytes + 4 * 2**20, 16 * 2**20), (3 * cap) // 4))


# ----------------------------------------------------------------------------
# Kernels
# ----------------------------------------------------------------------------
def _linear_kernel(x_ref, w_ref, b_ref, o_ref):
    # Per-node linear (linear_pre): row tile of x @ W + b, f32 compute.
    o_ref[...] = (
        jnp.dot(x_ref[...], w_ref[...], preferred_element_type=jnp.float32)
        + b_ref[...]
    ).astype(o_ref.dtype)


def _gin_layer_kernel(a_ref, h_ref, w_ref, b_ref, o_ref, *, apply_relu, pool_dtype):
    # pooled = (A + I)[row_tile, :] @ h   -- MXU matmul with f32 accumulation.
    # A is streamed as int8 (0/1) and cast here; h is stored in pool_dtype
    # between layers so no per-step cast of the resident block is needed.
    a = a_ref[...].astype(pool_dtype)
    h = h_ref[...]
    if h.dtype != pool_dtype:
        h = h.astype(pool_dtype)
    pooled = jnp.dot(a, h, preferred_element_type=jnp.float32)
    # GINConv's nn (a single Linear): bf16 MXU path in the perf config.
    w = w_ref[...]
    rhs = pooled if w.dtype == jnp.float32 else pooled.astype(w.dtype)
    out = jnp.dot(rhs, w, preferred_element_type=jnp.float32) + b_ref[...]
    if apply_relu:
        out = jnp.maximum(out, 0.0)
    o_ref[...] = out.astype(o_ref.dtype)


def _make_fused_kernel(num_gin_layers, feature_pre, pool_dtype):
    # One kernel for the whole forward pass (small graphs): everything stays
    # VMEM-resident, A is loaded exactly once.
    def kernel(*refs):
        a_ref, x_ref = refs[0], refs[1]
        o_ref = refs[-1]
        wb = refs[2:-1]
        h = x_ref[...]
        idx = 0
        if feature_pre:
            h = jnp.dot(h, wb[0][...], preferred_element_type=jnp.float32) + wb[1][...]
            idx = 2
        a = a_ref[...].astype(pool_dtype)
        for li in range(num_gin_layers):
            w = wb[idx + 2 * li][...]
            b = wb[idx + 2 * li + 1][...]
            pooled = jnp.dot(a, h.astype(pool_dtype), preferred_element_type=jnp.float32)
            rhs = pooled if w.dtype == jnp.float32 else pooled.astype(w.dtype)
            h = jnp.dot(rhs, w, preferred_element_type=jnp.float32) + b
            if li < num_gin_layers - 1:
                h = jnp.maximum(h, 0.0)
        o_ref[...] = h.astype(o_ref.dtype)

    return kernel


# ----------------------------------------------------------------------------
# Per-layer pallas_call wrappers (tiled / streaming path)
# ----------------------------------------------------------------------------
def _choose_tile_m(n, n_pad_k, max_feat_pad, budget):
    """Largest row tile whose streamed footprint fits; >=2 tiles when n>128;
    prefer the candidate that minimizes padded rows (least wasted work)."""
    if n <= 128:
        return max(8, _round_up(n, 8))
    best = None  # (padded_rows, tile)
    for tile in (2048, 1024, 512, 256, 128):
        if tile >= n:  # would give a single row tile -> second v7x TC idle
            continue
        foot = (
            2 * tile * n_pad_k                      # streamed int8 A tile (x2 buffers)
            + 2 * n_pad_k * max_feat_pad * 4        # resident h (worst case f32, x2)
            + 2 * max_feat_pad * max_feat_pad * 4   # weights
            + 2 * tile * max_feat_pad * 4           # output tile
            + (2 << 20)
        )
        if foot > budget:
            continue
        n_pad_m = _round_up(n, tile)
        if best is None or n_pad_m < best[0] or (n_pad_m == best[0] and tile > best[1]):
            best = (n_pad_m, tile)
    return best[1] if best else 128


def _run_linear(x_p, w_p, b_p, tile_m, out_dtype, cap):
    n_pad_m, din = x_p.shape
    dout = w_p.shape[1]
    foot = 2 * (tile_m * din * 4 + din * dout * 4 + dout * 4 + tile_m * dout * 4)
    return pl.pallas_call(
        _linear_kernel,
        out_shape=jax.ShapeDtypeStruct((n_pad_m, dout), out_dtype),
        grid=(n_pad_m // tile_m,),
        in_specs=[
            pl.BlockSpec((tile_m, din), lambda i: (i, 0)),
            pl.BlockSpec((din, dout), lambda i: (0, 0)),
            pl.BlockSpec((1, dout), lambda i: (0, 0)),
        ],
        out_specs=pl.BlockSpec((tile_m, dout), lambda i: (i, 0)),
        compiler_params=pltpu.CompilerParams(
            dimension_semantics=("parallel",),
            vmem_limit_bytes=_vmem_limit(foot, cap),
        ),
        cost_estimate=pl.CostEstimate(
            flops=2 * n_pad_m * din * dout,
            transcendentals=0,
            bytes_accessed=(n_pad_m * din + din * dout + dout + n_pad_m * dout) * 4,
        ),
    )(x_p, w_p, b_p)


def _run_gin_layer(a_p, h_p, w_p, b_p, tile_m, *, apply_relu, pool_dtype, out_dtype, cap):
    n_pad_m, n_pad_k = a_p.shape
    din = h_p.shape[1]
    dout = w_p.shape[1]
    h_bytes = jnp.dtype(h_p.dtype).itemsize
    w_bytes = jnp.dtype(w_p.dtype).itemsize
    foot = (
        2 * tile_m * n_pad_k * 1            # streamed int8 A row tile
        + 2 * n_pad_k * din * h_bytes       # resident h (default double-buffered)
        + 2 * din * dout * w_bytes + 2 * dout * 4
        + 2 * tile_m * dout * 4             # output tile
    )
    kernel = functools.partial(_gin_layer_kernel, apply_relu=apply_relu, pool_dtype=pool_dtype)
    return pl.pallas_call(
        kernel,
        out_shape=jax.ShapeDtypeStruct((n_pad_m, dout), out_dtype),
        grid=(n_pad_m // tile_m,),
        in_specs=[
            pl.BlockSpec((tile_m, n_pad_k), lambda i: (i, 0)),  # A row tile (int8, streamed)
            pl.BlockSpec((n_pad_k, din), lambda i: (0, 0)),     # full h (constant index)
            pl.BlockSpec((din, dout), lambda i: (0, 0)),        # W
            pl.BlockSpec((1, dout), lambda i: (0, 0)),          # b
        ],
        out_specs=pl.BlockSpec((tile_m, dout), lambda i: (i, 0)),
        compiler_params=pltpu.CompilerParams(
            dimension_semantics=("parallel",),  # v7x: split row tiles across both TCs
            vmem_limit_bytes=_vmem_limit(foot, cap),
        ),
        cost_estimate=pl.CostEstimate(
            flops=2 * n_pad_m * n_pad_k * din + 2 * n_pad_m * din * dout,
            transcendentals=0,
            bytes_accessed=n_pad_m * n_pad_k
            + n_pad_k * din * h_bytes
            + din * dout * w_bytes
            + dout * 4
            + n_pad_m * dout * jnp.dtype(out_dtype).itemsize,
        ),
    )(a_p, h_p, w_p, b_p)


# ----------------------------------------------------------------------------
# Full forward (TgGIN.gin, eval mode)
# ----------------------------------------------------------------------------
def gin_forward(params, x, adj, *, feature_pre=True, layer_num=2,
                pool_dtype=jnp.bfloat16, tile_m=None, mode="auto"):
    """adj: dense [N, N] 0/1 adjacency WITHOUT self loops (GINConv adds x_i itself).

    pool_dtype=jnp.float32  -> exact path (tight tolerance vs f32 reference).
    pool_dtype=jnp.bfloat16 -> perf path: h/W in bf16, f32 accumulation
                               (approximation of h, checked with a relative criterion).
    mode: "auto" | "fused" | "tiled".
    """
    n = x.shape[0]
    out_dim = params["w_out"].shape[1]
    cap = _vmem_capacity_bytes()
    budget = (3 * cap) // 4

    perf = jnp.dtype(pool_dtype) == jnp.dtype(jnp.bfloat16)
    h_store_dtype = jnp.bfloat16 if perf else jnp.float32  # inter-layer h dtype
    w_gin_dtype = jnp.bfloat16 if perf else jnp.float32    # GIN nn weight dtype

    n_pad_k = _round_up(n, LANE)  # A's K dim / h row count: 128-aligned only

    def pad2(a, rows, cols):
        return jnp.pad(a, ((0, rows - a.shape[0]), (0, cols - a.shape[1])))

    def pad_w(w, dtype):
        return pad2(w.astype(jnp.float32),
                    _round_up(w.shape[0], LANE), _round_up(w.shape[1], LANE)).astype(dtype)

    def pad_b(b):
        b = b.reshape(1, -1).astype(jnp.float32)
        return pad2(b, 1, _round_up(b.shape[1], LANE))

    # GIN nn Linear weights in application order: first, hidden..., out.
    gin_ws = [(params["w_first"], params["b_first"])]
    for i in range(layer_num - 2):
        gin_ws.append((params["w_hidden"][i], params["b_hidden"][i]))
    gin_ws.append((params["w_out"], params["b_out"]))

    feat_dims = [x.shape[1], out_dim] + [w.shape[0] for (w, _) in gin_ws]
    if feature_pre:
        feat_dims += [params["w_pre"].shape[0], params["w_pre"].shape[1]]
    max_feat_pad = max(_round_up(d, LANE) for d in feat_dims)

    # GINConv(eps=0, sum aggregation): nn(x_i + sum_{j in N(i)} x_j) == nn((A + I) @ x).
    # Stored as int8 0/1 (exact); cast to pool_dtype inside the kernels.
    # NOTE: padded columns of A (>= n) must stay zero so the padded h rows
    # (which become relu(b), not zero) never feed valid outputs.
    a_hat = (adj > 0).astype(jnp.int8) + jnp.eye(n, dtype=jnp.int8)

    # ----------------------- fused single-call path --------------------------
    w_bytes_sum = sum(_round_up(w.shape[0], LANE) * _round_up(w.shape[1], LANE) * 4
                      for (w, _) in gin_ws)
    if feature_pre:
        w_bytes_sum += (_round_up(params["w_pre"].shape[0], LANE)
                        * _round_up(params["w_pre"].shape[1], LANE) * 4)
    fused_foot = (n_pad_k * n_pad_k                 # int8 A
                  + 6 * n_pad_k * max_feat_pad * 4  # x / h / pooled temporaries
                  + w_bytes_sum + (4 << 20))
    use_fused = (mode == "fused") or (
        mode == "auto" and fused_foot <= min(budget // 2, 40 * 2**20))

    if use_fused:
        a_p = pad2(a_hat, n_pad_k, n_pad_k)
        x_p = pad2(x.astype(jnp.float32), n_pad_k, _round_up(x.shape[1], LANE))
        args = [a_p, x_p]
        if feature_pre:
            args += [pad_w(params["w_pre"], jnp.float32), pad_b(params["b_pre"])]
        for (w, b) in gin_ws:
            args += [pad_w(w, w_gin_dtype), pad_b(b)]
        dout_pad = _round_up(out_dim, LANE)
        kernel = _make_fused_kernel(len(gin_ws), feature_pre, pool_dtype)
        out = pl.pallas_call(
            kernel,
            out_shape=jax.ShapeDtypeStruct((n_pad_k, dout_pad), jnp.float32),
            compiler_params=pltpu.CompilerParams(
                vmem_limit_bytes=_vmem_limit(fused_foot, cap)),
        )(*args)
        return out[:n, :out_dim]

    # ----------------------- tiled / streaming path ---------------------------
    if tile_m is None:
        tile_m = _choose_tile_m(n, n_pad_k, max_feat_pad, budget)
    n_pad_m = _round_up(n, tile_m)  # row/output dim padded to TILE_M granularity

    a_p = pad2(a_hat, n_pad_m, n_pad_k)
    h = pad2(x.astype(jnp.float32), n_pad_m, _round_up(x.shape[1], LANE))

    if feature_pre:
        h = _run_linear(h, pad_w(params["w_pre"], jnp.float32), pad_b(params["b_pre"]),
                        tile_m, h_store_dtype, cap)

    num_gin = len(gin_ws)
    for li, (w, b) in enumerate(gin_ws):
        last = li == num_gin - 1
        # dropout between layers: identity in eval mode.
        h = _run_gin_layer(
            a_p, h[:n_pad_k], pad_w(w, w_gin_dtype), pad_b(b), tile_m,
            apply_relu=not last,
            pool_dtype=pool_dtype,
            out_dtype=jnp.float32 if last else h_store_dtype,
            cap=cap,
        )
    return h[:n, :out_dim]


# ----------------------------------------------------------------------------
# Deterministic params (shapes follow TgGIN.__init__) and pure-JAX reference.
# ----------------------------------------------------------------------------
def init_params(key, input_dim, feature_dim, hidden_dim, output_dim, layer_num,
                feature_pre=True):
    keys = iter(jax.random.split(key, 64))

    def linear(fan_in, fan_out):
        bound = 1.0 / (fan_in ** 0.5)
        w = jax.random.uniform(next(keys), (fan_in, fan_out), jnp.float32, -bound, bound)
        b = jax.random.uniform(next(keys), (fan_out,), jnp.float32, -bound, bound)
        return w, b

    params = {}
    if feature_pre:
        params["w_pre"], params["b_pre"] = linear(input_dim, feature_dim)
        first_in = feature_dim
    else:
        first_in = input_dim
    params["w_first"], params["b_first"] = linear(first_in, hidden_dim)
    params["w_hidden"], params["b_hidden"] = [], []
    for _ in range(layer_num - 2):
        w, b = linear(hidden_dim, hidden_dim)
        params["w_hidden"].append(w)
        params["b_hidden"].append(b)
    params["w_out"], params["b_out"] = linear(hidden_dim, output_dim)
    return params


def gin_ref(params, x, adj, *, feature_pre=True, layer_num=2):
    a_hat = adj + jnp.eye(adj.shape[0], dtype=adj.dtype)
    h = x
    if feature_pre:
        h = h @ params["w_pre"] + params["b_pre"]
    h = jnp.maximum((a_hat @ h) @ params["w_first"] + params["b_first"], 0.0)
    for i in range(layer_num - 2):
        h = jnp.maximum((a_hat @ h) @ params["w_hidden"][i] + params["b_hidden"][i], 0.0)
    h = (a_hat @ h) @ params["w_out"] + params["b_out"]
    return h


if __name__ == "__main__":
    # Small shapes: 300 nodes, input_dim=16, feature_dim=24, hidden_dim=32,
    # output_dim=8, layer_num=3 (one hidden GIN layer).
    N, INPUT_DIM, FEATURE_DIM, HIDDEN_DIM, OUTPUT_DIM = 300, 16, 24, 32, 8
    LAYER_NUM = 3

    key = jax.random.PRNGKey(0)
    k_adj, k_x, k_p = jax.random.split(key, 3)

    # Random symmetric binary adjacency, no self loops.
    rand = (jax.random.uniform(k_adj, (N, N)) < 0.05).astype(jnp.float32)
    adj = jnp.maximum(rand, rand.T) * (1.0 - jnp.eye(N, dtype=jnp.float32))

    x = jax.random.normal(k_x, (N, INPUT_DIM), jnp.float32)
    params = init_params(k_p, INPUT_DIM, FEATURE_DIM, HIDDEN_DIM, OUTPUT_DIM, LAYER_NUM)

    ref = gin_ref(params, x, adj, feature_pre=True, layer_num=LAYER_NUM)
    ref_scale = max(1.0, float(jnp.max(jnp.abs(ref))))

    def max_rel_err(out):
        return float(jnp.max(jnp.abs(out - ref))) / ref_scale

    # 1) exact f32 pooling, tiled/streaming path (explicit 128-row tiles, grid=3).
    out = jax.block_until_ready(
        gin_forward(params, x, adj, feature_pre=True, layer_num=LAYER_NUM,
                    pool_dtype=jnp.float32, tile_m=128, mode="tiled"))
    assert out.shape == (N, OUTPUT_DIM)
    assert jnp.allclose(out, ref, atol=1e-3, rtol=1e-3), "tiled f32 kernel mismatch"

    # 2) exact f32 pooling, fused single-call path.
    out = jax.block_until_ready(
        gin_forward(params, x, adj, feature_pre=True, layer_num=LAYER_NUM,
                    pool_dtype=jnp.float32, mode="fused"))
    assert out.shape == (N, OUTPUT_DIM)
    assert jnp.allclose(out, ref, atol=1e-3, rtol=1e-3), "fused f32 kernel mismatch"

    # 3) bf16 perf path, tiled (bf16 h/W, int8 A, f32 accumulation).
    #    h itself is approximated in bf16, so use a scale-relative criterion.
    out = jax.block_until_ready(
        gin_forward(params, x, adj, feature_pre=True, layer_num=LAYER_NUM,
                    pool_dtype=jnp.bfloat16, mode="tiled"))
    assert out.shape == (N, OUTPUT_DIM)
    assert max_rel_err(out) < 0.1, f"tiled bf16 rel err {max_rel_err(out)}"

    # 4) bf16 perf path, auto mode (picks the fused kernel at this size).
    out = jax.block_until_ready(
        gin_forward(params, x, adj, feature_pre=True, layer_num=LAYER_NUM,
                    pool_dtype=jnp.bfloat16, mode="auto"))
    assert out.shape == (N, OUTPUT_DIM)
    assert max_rel_err(out) < 0.1, f"fused bf16 rel err {max_rel_err(out)}"

    print("KERNEL_OK")
</pallas_src>

<mosaic_0001>
module attributes {stable_mosaic.version = 11 : i64} {
  func.func @_linear_kernel(%arg0: i32, %arg1: memref<128x128xf32, #tpu.memory_space<vmem>>, %arg2: memref<128x128xf32, #tpu.memory_space<vmem>>, %arg3: memref<1x128xf32, #tpu.memory_space<vmem>>, %arg4: memref<128x128xf32, #tpu.memory_space<vmem>>) attributes {dimension_semantics = [#tpu.dimension_semantics<parallel>], iteration_bounds = array<i64: 3>, scalar_prefetch = 0 : i64, scratch_operands = 0 : i64, tpu.core_type = #tpu.core_type<tc>, window_params = [{transform_indices = @transform_0, window_bounds = array<i64: 128, 128>}, {pipeline_mode = #tpu.pipeline_mode<synchronous>, transform_indices = @transform_1, window_bounds = array<i64: 128, 128>}, {pipeline_mode = #tpu.pipeline_mode<synchronous>, transform_indices = @transform_2, window_bounds = array<i64: 1, 128>}, {transform_indices = @transform_3, window_bounds = array<i64: 128, 128>}]} {
    %c0 = arith.constant 0 : index
    %c0_0 = arith.constant 0 : index
    %0 = vector.load %arg1[%c0, %c0_0] : memref<128x128xf32, #tpu.memory_space<vmem>>, vector<128x128xf32>
    %c0_1 = arith.constant 0 : index
    %c0_2 = arith.constant 0 : index
    %1 = vector.load %arg2[%c0_1, %c0_2] : memref<128x128xf32, #tpu.memory_space<vmem>>, vector<128x128xf32>
    %cst = arith.constant dense<0.000000e+00> : vector<128x128xf32>
    %2 = tpu.matmul %0, %1, %cst {dimension_numbers = #tpu.dot_dimension_numbers<[1], [0], [0], [1], [0, 0, 1, 1], [], []>} : vector<128x128xf32>, vector<128x128xf32>, vector<128x128xf32> -> vector<128x128xf32>
    %c0_3 = arith.constant 0 : index
    %c0_4 = arith.constant 0 : index
    %3 = vector.load %arg3[%c0_3, %c0_4] : memref<1x128xf32, #tpu.memory_space<vmem>>, vector<1x128xf32>
    %4 = vector.broadcast %3 : vector<1x128xf32> to vector<128x128xf32>
    %5 = arith.addf %2, %4 : vector<128x128xf32>
    %c0_5 = arith.constant 0 : index
    %c0_6 = arith.constant 0 : index
    %6 = vector.load %arg4[%c0_5, %c0_6] : memref<128x128xf32, #tpu.memory_space<vmem>>, vector<128x128xf32>
    tpu.vector_store %arg4[%c0_5, %c0_6], %5 {strides = array<i32>} : memref<128x128xf32, #tpu.memory_space<vmem>>, vector<128x128xf32>,
    return
  }
  func.func @transform_0(%arg0: i32) -> (i32, i32) {
    %c0_i32 = arith.constant 0 : i32
    %c0_i32_0 = arith.constant 0 : i32
    return %arg0, %c0_i32 : i32, i32
  }
  func.func @transform_1(%arg0: i32) -> (i32, i32) {
    %c0_i32 = arith.constant 0 : i32
    %c0_i32_0 = arith.constant 0 : i32
    %c0_i32_1 = arith.constant 0 : i32
    return %c0_i32, %c0_i32_0 : i32, i32
  }
  func.func @transform_2(%arg0: i32) -> (i32, i32) {
    %c0_i32 = arith.constant 0 : i32
    %c0_i32_0 = arith.constant 0 : i32
    %c0_i32_1 = arith.constant 0 : i32
    return %c0_i32, %c0_i32_0 : i32, i32
  }
  func.func @transform_3(%arg0: i32) -> (i32, i32) {
    %c0_i32 = arith.constant 0 : i32
    %c0_i32_0 = arith.constant 0 : i32
    return %arg0, %c0_i32 : i32, i32
  }
}

</mosaic_0001>

<llo_original>
// kernel: tpu_custom_call.1
$region0: #{tpu_custom_call.1}
  #allocation0 [shape = 'u32[]', space=smem, size = 0x4, offset = 0x4, fixed_abs, tag = 'smem constant byte address 0x4 - core index']
  #allocation1 [shape = 'u32[144,128]{1,0:T(1,128)}', space=vmem, size = 0x12000, scoped, tag = 'internal scratch']
  %s0 = inlined_call_operand.hbm [shape: f32[384,128], index: 0, kind: input, shape index: {}]
  %s1 = inlined_call_operand.hbm [shape: f32[128,128], index: 1, kind: input, shape index: {}]
  %s2 = inlined_call_operand.vmem [shape: f32[1,128], index: 2, kind: input, shape index: {}]
  %s3 = inlined_call_operand.hbm [shape: f32[384,128], index: 3, kind: output, shape index: {}]
  %s4 = sld [smem:[#allocation0]]
  $region53: #{tpu_custom_call.1} parent=0
    _
  %s6 = ssub.s32 1, %s4
  %s7 = scalar_select 0, %s6, %s4
  $region1: #{tpu_custom_call.1} parent=0
    #allocation2 [shape = 'u8[131072]{0}', space=vmem, size = 0x20000, scoped, tag = 'input window, operand 0']
    #allocation3 [shape = 's32[2]{0}', space=sflag, size = 0x8, scoped, tag = 'scoped memory for tpu_custom_call.1']
    #allocation4 [shape = 's32[2]{0}', space=sflag, size = 0x8, scoped, tag = 'scoped memory for tpu_custom_call.1']
    #allocation5 [shape = 'u8[65536]{0}', space=vmem, size = 0x10000, scoped, tag = 'input window, operand 1, single buffered']
    #allocation6 [shape = 's32[1]{0}', space=sflag, size = 0x4, scoped, tag = 'scoped memory for tpu_custom_call.1']
    #allocation7 [shape = 'u8[131072]{0}', space=vmem, size = 0x20000, scoped, tag = 'output window, operand 0']
    %8 = vsyncpa [#allocation3], 0
    %s9 = scalar_lea.sflag [#allocation3], 1
    %10 = vsyncpa %s9, 0
    %11 = vsyncpa [#allocation6], 0
    %12 = vsyncpa [#allocation4], 0
    %s13 = scalar_lea.sflag [#allocation4], 1
    %14 = vsyncpa %s13, 0
    loop: start=0, step=1, limit=5
    $region2: #{tpu_custom_call.1} parent=1 // loop_pre_header
      _
    $region3: #{tpu_custom_call.1} parent=1 // loop_header
      %s16 = sphi 0, %s20
      %p17 = scmp.ge.s32.totalorder %s16, 5
      %s26 = sphi 0, %s28
      %s29 = sphi 0, %s26
      %s30 = sphi 0, %s29
      %s46 = sphi 0, %s30
      %s50 = sphi 0, %s50
      %s52 = sphi 0, %s50
      %s53 = sphi 0, %s52
      %s67 = sphi 0, %s53
      %s71 = sphi 0, %s71
      %s73 = sphi 0, %s71
      %s74 = sphi 0, %s73
      %s88 = sphi 0, %s74
      %s94 = sphi 0, %s96
      %s97 = sphi 0, %s94
      %s98 = sphi 0, %s97
      %s114 = sphi 0, %s98
    $region4: #{tpu_custom_call.1} parent=1 // loop_header_branch
      %19 = sbr.rel (%p17) target = $region8
    $region5: #{tpu_custom_call.1} parent=1 // loop_body
      %s21 = ssub.s32 %s16, 1
      %s22 = ssub.s32 %s16, 2
      %s23 = sadd.s32 %s16, 1
      %s24 = ssub.s32 %s16, %s23
      %p25 = scmp.eq.s32.totalorder %s24, 0
      %s27 = sadd.s32 %s26, 1
      %s28 = scalar_select %p25, %s26, %s27
      %p31 = pneg %p25
      %p32 = scmp.eq.s32.totalorder %s16, 2
      %p33 = por %p31, %p32
      %p34 = scmp.ne.s32.totalorder %s26, %s29
      %p35 = scmp.eq.s32.totalorder %s16, 0
      %p36 = por %p34, %p35
      %p37 = scmp.ne.s32.totalorder %s26, %s29
      %p38 = scmp.eq.s32.totalorder %s21, 2
      %p39 = por %p37, %p38
      %p40 = scmp.ne.s32.totalorder %s29, %s30
      %p41 = scmp.eq.s32.totalorder %s21, 0
      %p42 = por %p40, %p41
      %p43 = scmp.ne.s32.totalorder %s29, %s30
      %p44 = scmp.eq.s32.totalorder %s22, 2
      %p45 = por %p43, %p44
      %p47 = scmp.ne.s32.totalorder %s30, %s46
      %p48 = scmp.eq.s32.totalorder %s22, 0
      %p49 = por %p47, %p48
      %s51 = sadd.s32 %s50, 1
      %p54 = scmp.eq.s32.totalorder %s16, 2
      %p55 = scmp.ne.s32.totalorder %s50, %s52
      %p56 = scmp.eq.s32.totalorder %s16, 0
      %p57 = por %p55, %p56
      %p58 = scmp.ne.s32.totalorder %s50, %s52
      %p59 = scmp.eq.s32.totalorder %s21, 2
      %p60 = por %p58, %p59
      %p61 = scmp.ne.s32.totalorder %s52, %s53
      %p62 = scmp.eq.s32.totalorder %s21, 0
      %p63 = por %p61, %p62
      %p64 = scmp.ne.s32.totalorder %s52, %s53
      %p65 = scmp.eq.s32.totalorder %s22, 2
      %p66 = por %p64, %p65
      %p68 = scmp.ne.s32.totalorder %s53, %s67
      %p69 = scmp.eq.s32.totalorder %s22, 0
      %p70 = por %p68, %p69
      %s72 = sadd.s32 %s71, 1
      %p75 = scmp.eq.s32.totalorder %s16, 2
      %p76 = scmp.ne.s32.totalorder %s71, %s73
      %p77 = scmp.eq.s32.totalorder %s16, 0
      %p78 = por %p76, %p77
      %p79 = scmp.ne.s32.totalorder %s71, %s73
      %p80 = scmp.eq.s32.totalorder %s21, 2
      %p81 = por %p79, %p80
      %p82 = scmp.ne.s32.totalorder %s73, %s74
      %p83 = scmp.eq.s32.totalorder %s21, 0
      %p84 = por %p82, %p83
      %p85 = scmp.ne.s32.totalorder %s73, %s74
      %p86 = scmp.eq.s32.totalorder %s22, 2
      %p87 = por %p85, %p86
      %p89 = scmp.ne.s32.totalorder %s74, %s88
      %p90 = scmp.eq.s32.totalorder %s22, 0
      %p91 = por %p89, %p90
      %s92 = ssub.s32 %s16, %s23
      %p93 = scmp.eq.s32.totalorder %s92, 0
      %s95 = sadd.s32 %s94, 1
      %s96 = scalar_select %p93, %s94, %s95
      %p99 = pneg %p93
      %p100 = scmp.eq.s32.totalorder %s16, 2
      %p101 = por %p99, %p100
      %p102 = scmp.ne.s32.totalorder %s94, %s97
      %p103 = scmp.eq.s32.totalorder %s16, 0
      %p104 = por %p102, %p103
      %p105 = scmp.ne.s32.totalorder %s94, %s97
      %p106 = scmp.eq.s32.totalorder %s21, 2
      %p107 = por %p105, %p106
      %p108 = scmp.ne.s32.totalorder %s97, %s98
      %p109 = scmp.eq.s32.totalorder %s21, 0
      %p110 = por %p108, %p109
      %p111 = scmp.ne.s32.totalorder %s97, %s98
      %p112 = scmp.eq.s32.totalorder %s22, 2
      %p113 = por %p111, %p112
      %p115 = scmp.ne.s32.totalorder %s98, %s114
      %p116 = scmp.eq.s32.totalorder %s22, 0
      %p117 = por %p115, %p116
      %p118 = scmp.le.s32.totalorder 1, %s16
      %p119 = scmp.lt.s32.totalorder %s16, 4
      %p120 = pnand %p118, %p119
      %p121 = pneg %p120
      // Predicated region
      $region9: #{tpu_custom_call.1} parent=5 // pred_check
        _
      $region10: #{tpu_custom_call.1} parent=5 // pred_check_branch
        %123 = sbr.rel (%p120) target = $region12
      $region11: #{tpu_custom_call.1} parent=5 // pred_region
        %s124 = ssub.s32 %s16, 1
        // Predicated region
        $region13: #{tpu_custom_call.1} parent=11 // pred_check
          %p125 = pneg %p63
        $region14: #{tpu_custom_call.1} parent=11 // pred_check_branch
          %127 = sbr.rel (%p125) target = $region16
        $region15: #{tpu_custom_call.1} parent=11 // pred_region
          %s129 = ssub.s32 2048, 2048
          %130 = vsyncadd [#allocation6], %s129
          %s131 = sshll.u32 [#allocation5], 4
          %s132 = int_to_ptr.vmem [resolvable:$true] %s131
          %137 = dma.hbm_to_vmem [thread:$0]  %s1, 2048, %s132, [#allocation6], 128, 128, 8
        $region16: #{tpu_custom_call.1} parent=11 // pred_fallthru
          _
        // Predicated region
        $region17: #{tpu_custom_call.1} parent=11 // pred_check
          %p138 = pneg %p84
        $region18: #{tpu_custom_call.1} parent=11 // pred_check_branch
          %140 = sbr.rel (%p138) target = $region20
        $region19: #{tpu_custom_call.1} parent=11 // pred_region
          _
        $region20: #{tpu_custom_call.1} parent=11 // pred_fallthru
          _
      $region12: #{tpu_custom_call.1} parent=5 // pred_fallthru
        _
      %p141 = scmp.lt.s32.totalorder %s16, 3
      // Predicated region
      $region21: #{tpu_custom_call.1} parent=5 // pred_check
        %p142 = pneg %p141
      $region22: #{tpu_custom_call.1} parent=5 // pred_check_branch
        %144 = sbr.rel (%p142) target = $region24
      $region23: #{tpu_custom_call.1} parent=5 // pred_region
        // Predicated region
        $region25: #{tpu_custom_call.1} parent=23 // pred_check
          %p145 = pneg %p36
        $region26: #{tpu_custom_call.1} parent=23 // pred_check_branch
          %147 = sbr.rel (%p145) target = $region28
        $region27: #{tpu_custom_call.1} parent=23 // pred_region
          %s148 = sand.u32 %s26, 1
          %s149 = scalar_lea.sflag [#allocation3], %s148
          %s150 = sand.u32 %s26, 1
          %s151 = smul.addr %s150, 128
          %s152 = scalar_lea.vmem [#allocation2], %s151
          %s153 = smul.u32 16, %s16
          %s155 = ssub.s32 2048, 2048
          %156 = vsyncadd %s149, %s155
          %s157 = smul.addr %s153, 128
          %s158 = scalar_lea.hbm %s0, %s157
          %s159 = sshll.u32 %s152, 4
          %s160 = int_to_ptr.vmem [resolvable:$true] %s159
          %165 = dma.hbm_to_vmem [thread:$0]  %s158, 2048, %s160, %s149, 128, 128, 8
        $region28: #{tpu_custom_call.1} parent=23 // pred_fallthru
          _
      $region24: #{tpu_custom_call.1} parent=5 // pred_fallthru
        _
      %p166 = scmp.le.s32.totalorder 1, %s16
      %p167 = scmp.lt.s32.totalorder %s16, 4
      %p168 = pnand %p166, %p167
      %p169 = pneg %p168
      // Predicated region
      $region29: #{tpu_custom_call.1} parent=5 // pred_check
        _
      $region30: #{tpu_custom_call.1} parent=5 // pred_check_branch
        %171 = sbr.rel (%p168) target = $region32
      $region31: #{tpu_custom_call.1} parent=5 // pred_region
        %s172 = ssub.s32 %s16, 1
        %s173 = sand.u32 %s29, 1
        %s174 = scalar_lea.sflag [#allocation3], %s173
        %s175 = sand.u32 %s29, 1
        %s176 = smul.addr %s175, 128
        %s177 = scalar_lea.vmem [#allocation2], %s176
        // Predicated region
        $region33: #{tpu_custom_call.1} parent=31 // pred_check
          %p178 = pneg %p42
        $region34: #{tpu_custom_call.1} parent=31 // pred_check_branch
          %180 = sbr.rel (%p178) target = $region36
        $region35: #{tpu_custom_call.1} parent=31 // pred_region
          %181 = dma.done %s174, 2048
        $region36: #{tpu_custom_call.1} parent=31 // pred_fallthru
          _
        // Predicated region
        $region37: #{tpu_custom_call.1} parent=31 // pred_check
          %p182 = pneg %p63
        $region38: #{tpu_custom_call.1} parent=31 // pred_check_branch
          %184 = sbr.rel (%p182) target = $region40
        $region39: #{tpu_custom_call.1} parent=31 // pred_region
          %185 = dma.done [#allocation6], 2048
        $region40: #{tpu_custom_call.1} parent=31 // pred_fallthru
          _
        %s186 = sand.u32 %s29, 1
        %s187 = scalar_lea.sflag [#allocation3], %s186
        %s188 = sand.u32 %s29, 1
        %s189 = smul.addr %s188, 128
        %s190 = scalar_lea.vmem [#allocation2], %s189
        %p191 = pneg %p42
        %p192 = pneg %p39
        %p193 = pneg %p63
        %p194 = pneg %p60
        %p195 = pneg %p84
        %p196 = pneg %p81
        %p197 = pneg %p110
        %p198 = pneg %p107
        %s199 = sand.u32 %s97, 1
        %s200 = scalar_lea.sflag [#allocation4], %s199
        %s201 = sand.u32 %s97, 1
        %s202 = smul.addr %s201, 128
        %s203 = scalar_lea.vmem [#allocation7], %s202
        %s204 = smul.u32 16, %s21
        %s205 = smul.u32 16, %s21
        %v206 = vld [vmem:[%s177] sm:$0xff]
        %v207 = vld [vmem:[%s177 + $0x8] sm:$0xff]
        %v208 = vld [vmem:[%s177 + $0x10] sm:$0xff]
        %v209 = vld [vmem:[%s177 + $0x18] sm:$0xff]
        %v210 = vld [vmem:[%s177 + $0x20] sm:$0xff]
        %v211 = vld [vmem:[%s177 + $0x28] sm:$0xff]
        %v212 = vld [vmem:[%s177 + $0x30] sm:$0xff]
        %v213 = vld [vmem:[%s177 + $0x38] sm:$0xff]
        %v214 = vld [vmem:[%s177 + $0x40] sm:$0xff]
        %v215 = vld [vmem:[%s177 + $0x48] sm:$0xff]
        %v216 = vld [vmem:[%s177 + $0x50] sm:$0xff]
        %v217 = vld [vmem:[%s177 + $0x58] sm:$0xff]
        %v218 = vld [vmem:[%s177 + $0x60] sm:$0xff]
        %v219 = vld [vmem:[%s177 + $0x68] sm:$0xff]
        %v220 = vld [vmem:[%s177 + $0x70] sm:$0xff]
        %v221 = vld [vmem:[%s177 + $0x78] sm:$0xff]
        %v222 = vld [vmem:[#allocation5] sm:$0xff]
        %v223 = vld [vmem:[#allocation5 + $0x8] sm:$0xff]
        %v224 = vld [vmem:[#allocation5 + $0x10] sm:$0xff]
        %v225 = vld [vmem:[#allocation5 + $0x18] sm:$0xff]
        %v226 = vld [vmem:[#allocation5 + $0x20] sm:$0xff]
        %v227 = vld [vmem:[#allocation5 + $0x28] sm:$0xff]
        %v228 = vld [vmem:[#allocation5 + $0x30] sm:$0xff]
        %v229 = vld [vmem:[#allocation5 + $0x38] sm:$0xff]
        %v230 = vld [vmem:[#allocation5 + $0x40] sm:$0xff]
        %v231 = vld [vmem:[#allocation5 + $0x48] sm:$0xff]
        %v232 = vld [vmem:[#allocation5 + $0x50] sm:$0xff]
        %v233 = vld [vmem:[#allocation5 + $0x58] sm:$0xff]
        %v234 = vld [vmem:[#allocation5 + $0x60] sm:$0xff]
        %v235 = vld [vmem:[#allocation5 + $0x68] sm:$0xff]
        %v236 = vld [vmem:[#allocation5 + $0x70] sm:$0xff]
        %v237 = vld [vmem:[#allocation5 + $0x78] sm:$0xff]
        %v238 = vld [vmem:[%s2] sm:$0x1]
        %v240 = vlaneseq
        %v241 = vshrl.u32 %v240, 7
        %v242 = vsub.s32 0, %v241
        %v243 = vrot.slane %v238, %v242
        %245 = vmatprep.subr.mxu0 0.0
        %246 = vmatpush1.msra.mxu0 %v222
        %247 = vmatprep.subr.mxu0 0.0
        %248 = vmatpush1.msra.mxu0 %v223
        %249 = vmatprep.subr.mxu0 0.0
        %250 = vmatpush1.msra.mxu0 %v224
        %251 = vmatprep.subr.mxu0 0.0
        %252 = vmatpush1.msra.mxu0 %v225
        %253 = vmatprep.subr.mxu0 0.0
        %254 = vmatpush1.msra.mxu0 %v226
        %255 = vmatprep.subr.mxu0 0.0
        %256 = vmatpush1.msra.mxu0 %v227
        %257 = vmatprep.subr.mxu0 0.0
        %258 = vmatpush1.msra.mxu0 %v228
        %259 = vmatprep.subr.mxu0 0.0
        %260 = vmatpush1.msra.mxu0 %v229
        %261 = vmatprep.subr.mxu0 0.0
        %262 = vmatpush1.msra.mxu0 %v230
        %263 = vmatprep.subr.mxu0 0.0
        %264 = vmatpush1.msra.mxu0 %v231
        %265 = vmatprep.subr.mxu0 0.0
        %266 = vmatpush1.msra.mxu0 %v232
        %267 = vmatprep.subr.mxu0 0.0
        %268 = vmatpush1.msra.mxu0 %v233
        %269 = vmatprep.subr.mxu0 0.0
        %270 = vmatpush1.msra.mxu0 %v234
        %271 = vmatprep.subr.mxu0 0.0
        %272 = vmatpush1.msra.mxu0 %v235
        %273 = vmatprep.subr.mxu0 0.0
        %274 = vmatpush1.msra.mxu0 %v236
        %275 = vmatprep.subr.mxu0 0.0
        %276 = vmatpush1.msra.mxu0 %v237
        %277 = vmatprep.subr.mxu0 0.0
        %278 = vmatpush1.msra.mxu0 0.0
        %279 = vmatprep.subr.mxu0 0.0
        %280 = vmatpush1.msra.mxu0 0.0
        %281 = vmatprep.subr.mxu0 0.0
        %282 = vmatpush1.msra.mxu0 0.0
        %283 = vmatprep.subr.mxu0 0.0
        %284 = vmatpush1.msra.mxu0 0.0
        %285 = vmatprep.subr.mxu0 0.0
        %286 = vmatpush1.msra.mxu0 0.0
        %287 = vmatprep.subr.mxu0 0.0
        %288 = vmatpush1.msra.mxu0 0.0
        %289 = vmatprep.subr.mxu0 0.0
        %290 = vmatpush1.msra.mxu0 0.0
        %291 = vmatprep.subr.mxu0 0.0
        %292 = vmatpush1.msra.mxu0 0.0
        %293 = vmatprep.subr.mxu0 0.0
        %294 = vmatpush1.msra.mxu0 0.0
        %295 = vmatprep.subr.mxu0 0.0
        %296 = vmatpush1.msra.mxu0 0.0
        %297 = vmatprep.subr.mxu0 0.0
        %298 = vmatpush1.msra.mxu0 0.0
        %299 = vmatprep.subr.mxu0 0.0
        %300 = vmatpush1.msra.mxu0 0.0
        %301 = vmatprep.subr.mxu0 0.0
        %302 = vmatpush1.msra.mxu0 0.0
        %303 = vmatprep.subr.mxu0 0.0
        %304 = vmatpush1.msra.mxu0 0.0
        %305 = vmatprep.subr.mxu0 0.0
        %306 = vmatpush1.msra.mxu0 0.0
        %307 = vmatprep.subr.mxu0 0.0
        %308 = vmatpush1.msra.mxu0 0.0
        %309 = vmatprep.mubr.f32.mxu0 0.0
        %310 = vmatmul.mubr.f32.gmra.mrb[0].mxu0 %v206
        %v311 = vpop.f32.mrb[0].mxu0
        %v312 = vadd.f32 %v243, %v311
        %v313 = vpop.f32.mrb[0].mxu0
        %314 = vmatprep.mubr.f32.mxu0 0.0
        %315 = vmatmul.mubr.f32.gmra.mrb[0].mxu0 %v207
        %v316 = vpop.f32.mrb[0].mxu0
        %v317 = vadd.f32 %v243, %v316
        %v318 = vpop.f32.mrb[0].mxu0
        %319 = vmatprep.mubr.f32.mxu0 0.0
        %320 = vmatmul.mubr.f32.gmra.mrb[0].mxu0 %v208
        %v321 = vpop.f32.mrb[0].mxu0
        %v322 = vadd.f32 %v243, %v321
        %v323 = vpop.f32.mrb[0].mxu0
        %324 = vmatprep.mubr.f32.mxu0 0.0
        %325 = vmatmul.mubr.f32.gmra.mrb[0].mxu0 %v209
        %v326 = vpop.f32.mrb[0].mxu0
        %v327 = vadd.f32 %v243, %v326
        %v328 = vpop.f32.mrb[0].mxu0
        %329 = vmatprep.mubr.f32.mxu0 0.0
        %330 = vmatmul.mubr.f32.gmra.mrb[0].mxu0 %v210
        %v331 = vpop.f32.mrb[0].mxu0
        %v332 = vadd.f32 %v243, %v331
        %v333 = vpop.f32.mrb[0].mxu0
        %334 = vmatprep.mubr.f32.mxu0 0.0
        %335 = vmatmul.mubr.f32.gmra.mrb[0].mxu0 %v211
        %v336 = vpop.f32.mrb[0].mxu0
        %v337 = vadd.f32 %v243, %v336
        %v338 = vpop.f32.mrb[0].mxu0
        %339 = vmatprep.mubr.f32.mxu0 0.0
        %340 = vmatmul.mubr.f32.gmra.mrb[0].mxu0 %v212
        %v341 = vpop.f32.mrb[0].mxu0
        %v342 = vadd.f32 %v243, %v341
        %v343 = vpop.f32.mrb[0].mxu0
        %344 = vmatprep.mubr.f32.mxu0 0.0
        %345 = vmatmul.mubr.f32.gmra.mrb[0].mxu0 %v213
        %v346 = vpop.f32.mrb[0].mxu0
        %v347 = vadd.f32 %v243, %v346
        %v348 = vpop.f32.mrb[0].mxu0
        %349 = vmatprep.mubr.f32.mxu0 0.0
        %350 = vmatmul.mubr.f32.gmra.mrb[0].mxu0 %v214
        %v351 = vpop.f32.mrb[0].mxu0
        %v352 = vadd.f32 %v243, %v351
        %v353 = vpop.f32.mrb[0].mxu0
        %354 = vmatprep.mubr.f32.mxu0 0.0
        %355 = vmatmul.mubr.f32.gmra.mrb[0].mxu0 %v215
        %v356 = vpop.f32.mrb[0].mxu0
        %v357 = vadd.f32 %v243, %v356
        %v358 = vpop.f32.mrb[0].mxu0
        %359 = vmatprep.mubr.f32.mxu0 0.0
        %360 = vmatmul.mubr.f32.gmra.mrb[0].mxu0 %v216
        %v361 = vpop.f32.mrb[0].mxu0
        %v362 = vadd.f32 %v243, %v361
        %v363 = vpop.f32.mrb[0].mxu0
        %364 = vmatprep.mubr.f32.mxu0 0.0
        %365 = vmatmul.mubr.f32.gmra.mrb[0].mxu0 %v217
        %v366 = vpop.f32.mrb[0].mxu0
        %v367 = vadd.f32 %v243, %v366
        %v368 = vpop.f32.mrb[0].mxu0
        %369 = vmatprep.mubr.f32.mxu0 0.0
        %370 = vmatmul.mubr.f32.gmra.mrb[0].mxu0 %v218
        %v371 = vpop.f32.mrb[0].mxu0
        %v372 = vadd.f32 %v243, %v371
        %v373 = vpop.f32.mrb[0].mxu0
        %374 = vmatprep.mubr.f32.mxu0 0.0
        %375 = vmatmul.mubr.f32.gmra.mrb[0].mxu0 %v219
        %v376 = vpop.f32.mrb[0].mxu0
        %v377 = vadd.f32 %v243, %v376
        %v378 = vpop.f32.mrb[0].mxu0
        %379 = vmatprep.mubr.f32.mxu0 0.0
        %380 = vmatmul.mubr.f32.gmra.mrb[0].mxu0 %v220
        %v381 = vpop.f32.mrb[0].mxu0
        %v382 = vadd.f32 %v243, %v381
        %v383 = vpop.f32.mrb[0].mxu0
        %384 = vmatprep.mubr.f32.mxu0 0.0
        %385 = vmatmul.mubr.f32.gmra.mrb[0].mxu0 %v221
        %v386 = vpop.f32.mrb[0].mxu0
        %v387 = vadd.f32 %v243, %v386
        %v388 = vpop.f32.mrb[0].mxu0
        %389 = vdwg.mxu0
        %390 = vst [vmem:[%s203] sm:$0xff] %v312
        %391 = vst [vmem:[%s203 + $0x8] sm:$0xff] %v317
        %392 = vst [vmem:[%s203 + $0x10] sm:$0xff] %v322
        %393 = vst [vmem:[%s203 + $0x18] sm:$0xff] %v327
        %394 = vst [vmem:[%s203 + $0x20] sm:$0xff] %v332
        %395 = vst [vmem:[%s203 + $0x28] sm:$0xff] %v337
        %396 = vst [vmem:[%s203 + $0x30] sm:$0xff] %v342
        %397 = vst [vmem:[%s203 + $0x38] sm:$0xff] %v347
        %398 = vst [vmem:[%s203 + $0x40] sm:$0xff] %v352
        %399 = vst [vmem:[%s203 + $0x48] sm:$0xff] %v357
        %400 = vst [vmem:[%s203 + $0x50] sm:$0xff] %v362
        %401 = vst [vmem:[%s203 + $0x58] sm:$0xff] %v367
        %402 = vst [vmem:[%s203 + $0x60] sm:$0xff] %v372
        %403 = vst [vmem:[%s203 + $0x68] sm:$0xff] %v377
        %404 = vst [vmem:[%s203 + $0x70] sm:$0xff] %v382
        %405 = vst [vmem:[%s203 + $0x78] sm:$0xff] %v387
        %s406 = sand.u32 %s97, 1
        %s407 = scalar_lea.sflag [#allocation4], %s406
        %s408 = sand.u32 %s97, 1
        %s409 = smul.addr %s408, 128
        %s410 = scalar_lea.vmem [#allocation7], %s409
        // Predicated region
        $region41: #{tpu_custom_call.1} parent=31 // pred_check
          %p411 = pneg %p107
        $region42: #{tpu_custom_call.1} parent=31 // pred_check_branch
          %413 = sbr.rel (%p411) target = $region44
        $region43: #{tpu_custom_call.1} parent=31 // pred_region
          %s414 = smul.u32 16, %s21
          %s416 = ssub.s32 2048, 2048
          %417 = vsyncadd %s407, %s416
          %s418 = smul.addr %s414, 128
          %s419 = scalar_lea.hbm %s3, %s418
          %s420 = sshll.u32 %s410, 4
          %s421 = int_to_ptr.vmem [resolvable:$true] %s420
          %426 = dma.vmem_to_hbm [thread:$0]  %s421, 2048, %s419, %s407, 128, 128, 8
        $region44: #{tpu_custom_call.1} parent=31 // pred_fallthru
          _
      $region32: #{tpu_custom_call.1} parent=5 // pred_fallthru
        _
      %p427 = scmp.le.s32.totalorder 2, %s16
      // Predicated region
      $region45: #{tpu_custom_call.1} parent=5 // pred_check
        %p428 = pneg %p427
      $region46: #{tpu_custom_call.1} parent=5 // pred_check_branch
        %430 = sbr.rel (%p428) target = $region48
      $region47: #{tpu_custom_call.1} parent=5 // pred_region
        %s431 = ssub.s32 %s16, 2
        // Predicated region
        $region49: #{tpu_custom_call.1} parent=47 // pred_check
          %p432 = pneg %p113
        $region50: #{tpu_custom_call.1} parent=47 // pred_check_branch
          %434 = sbr.rel (%p432) target = $region52
        $region51: #{tpu_custom_call.1} parent=47 // pred_region
          %s435 = sand.u32 %s98, 1
          %s436 = scalar_lea.sflag [#allocation4], %s435
          %s437 = sand.u32 %s98, 1
          %s438 = smul.addr %s437, 128
          %s439 = scalar_lea.vmem [#allocation7], %s438
          %440 = dma.done %s436, 2048
        $region52: #{tpu_custom_call.1} parent=47 // pred_fallthru
          _
      $region48: #{tpu_custom_call.1} parent=5 // pred_fallthru
        _
    $region6: #{tpu_custom_call.1} parent=1 // loop_footer
      %s20 = sadd.s32 1, %s16
    $region7: #{tpu_custom_call.1} parent=1 // loop_footer_branch
      %15 = sbr.rel target = $region3
    $region8: #{tpu_custom_call.1} parent=1 // loop_exit
      _
    %441 = vsyncpa [#allocation3], 1
    %s442 = scalar_lea.sflag [#allocation3], 1
    %443 = vsyncpa %s442, 1
    %444 = vsyncpa [#allocation6], 1
    %445 = vsyncpa [#allocation4], 1
    %s446 = scalar_lea.sflag [#allocation4], 1
    %447 = vsyncpa %s446, 1

</llo_original>
